<compile_context>
chip_gen: v6e
topology: v6e:2x2x1
jax: 0.10.0
libtpu: 0.0.40
codegen_flags: <defaults>
</compile_context>

<pallas_src>
import functools

import jax
import jax.numpy as jnp
from jax.experimental import pallas as pl
from jax.experimental.pallas import tpu as pltpu

LANE = 128  # pad all feature dims to the 128-lane vreg width


# ----------------------------- Pallas kernel ------------------------------

def _clip_branch_kernel(
    img_x_ref, img_w1_ref, img_b1_ref, img_w2_ref, img_b2_ref,
    txt_ids_ref, tok_emb_ref, txt_w1_ref, txt_b1_ref, txt_w2_ref, txt_b2_ref,
    out_ref, *, batch, n_patches, seq_len):
  """grid=(2,): step 0 = image branch, step 1 = text branch.

  img_x   : (B*Np, 128) bf16   flattened + lane-padded image patches
  *_w*    : (128, 128)  bf16   lane-padded weights
  *_b*    : (1, 128)    f32    lane-padded biases
  txt_ids : (1, BSpad)  int32  lane-major token ids (padded with 0)
  tok_emb : (128, 128)  bf16   lane/vocab-padded embedding table
  out_ref : (B, 128)    f32    (leading branch dim squeezed by BlockSpec)
  """
  branch = pl.program_id(0)

  def encode(x_bf16, n_tokens, w1_ref, b1_ref, w2_ref, b2_ref):
    # (B*T, 128) @ (128, 128) on the MXU, f32 accumulate.
    h = jnp.dot(x_bf16, w1_ref[...], preferred_element_type=jnp.float32)
    h = jax.nn.gelu(h + b1_ref[...])                       # f32 VPU/EUP epilogue
    # Mean-pool over tokens/patches: f32 sublane reduce, 1/T applied in f32.
    pooled = jnp.sum(h.reshape(batch, n_tokens, LANE), axis=1) * (1.0 / n_tokens)
    out = jnp.dot(pooled.astype(jnp.bfloat16), w2_ref[...],
                  preferred_element_type=jnp.float32)      # (B, 128)
    return out + b2_ref[...]

  @pl.when(branch == 0)
  def _image():
    out_ref[...] = encode(img_x_ref[...], n_patches,
                          img_w1_ref, img_b1_ref, img_w2_ref, img_b2_ref)

  @pl.when(branch == 1)
  def _text():
    # In-kernel embedding "gather": transposed one-hot built with a plain VPU
    # compare against lane-major ids, contracted on the MXU.
    ids = txt_ids_ref[...]                                 # (1, BSpad) int32
    vpad, bs_pad = tok_emb_ref.shape[0], ids.shape[1]
    iota_v = jax.lax.broadcasted_iota(jnp.int32, (vpad, bs_pad), 0)
    onehot_t = (iota_v == ids).astype(jnp.bfloat16)        # (Vpad, BSpad)
    # emb[r, d] = tok_emb[ids[r], d]   (transposed-LHS matmul, f32 acc)
    emb = jax.lax.dot_general(
        onehot_t, tok_emb_ref[...],
        dimension_numbers=(((0,), (0,)), ((), ())),
        preferred_element_type=jnp.float32)                # (BSpad, 128)
    emb = emb[:batch * seq_len].astype(jnp.bfloat16)       # drop id padding
    out_ref[...] = encode(emb, seq_len,
                          txt_w1_ref, txt_b1_ref, txt_w2_ref, txt_b2_ref)


def _clip_pallas_call(args, *, batch, n_patches, seq_len):
  """One pallas_call, two grid steps (image / text), megacore-parallel."""
  kernel = functools.partial(_clip_branch_kernel, batch=batch,
                             n_patches=n_patches, seq_len=seq_len)
  in_specs = [pl.BlockSpec(a.shape, lambda i: (0, 0)) for a in args]
  grid_spec = pltpu.PrefetchScalarGridSpec(
      num_scalar_prefetch=0,
      grid=(2,),                                  # step 0: image, step 1: text
      in_specs=in_specs,
      out_specs=pl.BlockSpec((None, batch, LANE), lambda i: (i, 0, 0)),
  )
  out = pl.pallas_call(
      kernel,
      out_shape=jax.ShapeDtypeStruct((2, batch, LANE), jnp.float32),
      grid_spec=grid_spec,
      compiler_params=pltpu.CompilerParams(
          dimension_semantics=("parallel",)),     # shard branches across TCs (v7x)
  )(*args)
  return out[0], out[1]


# ------------------------------ wrapper glue -------------------------------

def _pad2(x, rows, cols):
  r, c = x.shape
  return jnp.pad(x, ((0, rows - r), (0, cols - c)))


def patchify_nchw(image, patch):
  """image: [B, C, H, W] -> [B, num_patches, C*patch*patch]."""
  B, C, H, W = image.shape
  gh, gw = H // patch, W // patch
  x = image.reshape(B, C, gh, patch, gw, patch)
  x = jnp.transpose(x, (0, 2, 4, 1, 3, 5))          # [B, gh, gw, C, p, p]
  return x.reshape(B, gh * gw, C * patch * patch)


def init_params(key, *, in_chans=4, patch=4, hidden=32, embed_dim=16, vocab=64):
  ks = jax.random.split(key, 7)
  patch_dim = in_chans * patch * patch
  s = 0.02
  return {
      # image encoder
      "img_w1": (s * jax.random.normal(ks[0], (patch_dim, hidden))).astype(jnp.float32),
      "img_b1": jnp.zeros((1, hidden), jnp.float32),
      "img_w2": (s * jax.random.normal(ks[1], (hidden, embed_dim))).astype(jnp.float32),
      "img_b2": jnp.zeros((1, embed_dim), jnp.float32),
      # text encoder
      "tok_emb": (s * jax.random.normal(ks[2], (vocab, hidden))).astype(jnp.float32),
      "txt_w1": (s * jax.random.normal(ks[3], (hidden, hidden))).astype(jnp.float32),
      "txt_b1": jnp.zeros((1, hidden), jnp.float32),
      "txt_w2": (s * jax.random.normal(ks[4], (hidden, embed_dim))).astype(jnp.float32),
      "txt_b2": jnp.zeros((1, embed_dim), jnp.float32),
  }


def prepare_params(params):
  """Pad + cast weights ONCE (cached outside the per-call forward)."""
  vocab = params["tok_emb"].shape[0]
  assert vocab <= LANE and params["img_w1"].shape[0] <= LANE
  vpad = ((vocab + LANE - 1) // LANE) * LANE
  return {
      "img_w1": _pad2(params["img_w1"], LANE, LANE).astype(jnp.bfloat16),
      "img_b1": _pad2(params["img_b1"], 1, LANE),
      "img_w2": _pad2(params["img_w2"], LANE, LANE).astype(jnp.bfloat16),
      "img_b2": _pad2(params["img_b2"], 1, LANE),
      "tok_emb": _pad2(params["tok_emb"], vpad, LANE).astype(jnp.bfloat16),
      "txt_w1": _pad2(params["txt_w1"], LANE, LANE).astype(jnp.bfloat16),
      "txt_b1": _pad2(params["txt_b1"], 1, LANE),
      "txt_w2": _pad2(params["txt_w2"], LANE, LANE).astype(jnp.bfloat16),
      "txt_b2": _pad2(params["txt_b2"], 1, LANE),
  }


@functools.partial(jax.jit, static_argnames=("patch", "embed_dim"))
def clip_forward(prepared, image, text, *, patch=4, embed_dim=16):
  """Equivalent of CLIP.forward(image, text) -> (image_feat, text_feat)."""
  B = image.shape[0]

  # ---- image branch prep: patchify, flatten batch, pad to 128 lanes, bf16 ----
  patches = patchify_nchw(image.astype(jnp.float32), patch)   # (B, Np, Cp2)
  Np, pdim = patches.shape[1], patches.shape[2]
  img_x = _pad2(patches.reshape(B * Np, pdim), B * Np, LANE).astype(jnp.bfloat16)

  # ---- text branch prep: lane-major int32 ids padded to a 128-lane row ----
  S = text.shape[1]
  bs = B * S
  bs_pad = ((bs + LANE - 1) // LANE) * LANE
  txt_ids = jnp.pad(text.reshape(1, bs).astype(jnp.int32),
                    ((0, 0), (0, bs_pad - bs)))

  args = (img_x,
          prepared["img_w1"], prepared["img_b1"],
          prepared["img_w2"], prepared["img_b2"],
          txt_ids, prepared["tok_emb"],
          prepared["txt_w1"], prepared["txt_b1"],
          prepared["txt_w2"], prepared["txt_b2"])
  img_out, txt_out = _clip_pallas_call(args, batch=B, n_patches=Np, seq_len=S)
  return img_out[:, :embed_dim], txt_out[:, :embed_dim]


def _reference(params, image, text, patch):
  """Pure-JAX reference (f32) for a loose correctness check."""
  patches = patchify_nchw(image.astype(jnp.float32), patch)
  h = jax.nn.gelu(patches @ params["img_w1"] + params["img_b1"])
  img = h.mean(axis=1) @ params["img_w2"] + params["img_b2"]
  emb = jnp.take(params["tok_emb"], text, axis=0)
  h = jax.nn.gelu(emb @ params["txt_w1"] + params["txt_b1"])
  txt = h.mean(axis=1) @ params["txt_w2"] + params["txt_b2"]
  return img, txt


# --------------------------------- main -----------------------------------

if __name__ == "__main__":
  key = jax.random.PRNGKey(0)
  k_img, k_txt, k_par = jax.random.split(key, 3)

  B, C, H, W = 2, 4, 16, 16
  S, VOCAB = 8, 64
  PATCH = 4
  EMBED = 16

  image = jax.random.normal(k_img, (B, C, H, W), dtype=jnp.float32)   # NCHW
  text = jax.random.randint(k_txt, (B, S), 0, VOCAB, dtype=jnp.int32)

  params = init_params(k_par, in_chans=C, patch=PATCH,
                       hidden=32, embed_dim=EMBED, vocab=VOCAB)
  prepared = prepare_params(params)   # pad/cast once, reused every call

  image_feat, text_feat = clip_forward(prepared, image, text,
                                       patch=PATCH, embed_dim=EMBED)
  jax.block_until_ready((image_feat, text_feat))

  assert image_feat.shape == (B, EMBED) and text_feat.shape == (B, EMBED)
  assert jnp.all(jnp.isfinite(image_feat)) and jnp.all(jnp.isfinite(text_feat))

  ref_img, ref_txt = _reference(params, image, text, PATCH)
  assert jnp.allclose(image_feat, ref_img, rtol=0.1, atol=5e-3)
  assert jnp.allclose(text_feat, ref_txt, rtol=0.1, atol=5e-3)

  print("KERNEL_OK")
</pallas_src>

<mosaic_0001>
module attributes {stable_mosaic.version = 11 : i64} {
  func.func @_clip_branch_kernel(%arg0: i32, %arg1: memref<32x128xbf16, #tpu.memory_space<vmem>>, %arg2: memref<128x128xbf16, #tpu.memory_space<vmem>>, %arg3: memref<1x128xf32, #tpu.memory_space<vmem>>, %arg4: memref<128x128xbf16, #tpu.memory_space<vmem>>, %arg5: memref<1x128xf32, #tpu.memory_space<vmem>>, %arg6: memref<1x128xi32, #tpu.memory_space<vmem>>, %arg7: memref<128x128xbf16, #tpu.memory_space<vmem>>, %arg8: memref<128x128xbf16, #tpu.memory_space<vmem>>, %arg9: memref<1x128xf32, #tpu.memory_space<vmem>>, %arg10: memref<128x128xbf16, #tpu.memory_space<vmem>>, %arg11: memref<1x128xf32, #tpu.memory_space<vmem>>, %arg12: memref<1x2x128xf32, #tpu.memory_space<vmem>>) attributes {dimension_semantics = [#tpu.dimension_semantics<parallel>], iteration_bounds = array<i64: 2>, scalar_prefetch = 0 : i64, scratch_operands = 0 : i64, tpu.core_type = #tpu.core_type<tc>, window_params = [{pipeline_mode = #tpu.pipeline_mode<synchronous>, transform_indices = @transform_0, window_bounds = array<i64: 32, 128>}, {pipeline_mode = #tpu.pipeline_mode<synchronous>, transform_indices = @transform_1, window_bounds = array<i64: 128, 128>}, {pipeline_mode = #tpu.pipeline_mode<synchronous>, transform_indices = @transform_2, window_bounds = array<i64: 1, 128>}, {pipeline_mode = #tpu.pipeline_mode<synchronous>, transform_indices = @transform_3, window_bounds = array<i64: 128, 128>}, {pipeline_mode = #tpu.pipeline_mode<synchronous>, transform_indices = @transform_4, window_bounds = array<i64: 1, 128>}, {pipeline_mode = #tpu.pipeline_mode<synchronous>, transform_indices = @transform_5, window_bounds = array<i64: 1, 128>}, {pipeline_mode = #tpu.pipeline_mode<synchronous>, transform_indices = @transform_6, window_bounds = array<i64: 128, 128>}, {pipeline_mode = #tpu.pipeline_mode<synchronous>, transform_indices = @transform_7, window_bounds = array<i64: 128, 128>}, {pipeline_mode = #tpu.pipeline_mode<synchronous>, transform_indices = @transform_8, window_bounds = array<i64: 1, 128>}, {pipeline_mode = #tpu.pipeline_mode<synchronous>, transform_indices = @transform_9, window_bounds = array<i64: 128, 128>}, {pipeline_mode = #tpu.pipeline_mode<synchronous>, transform_indices = @transform_10, window_bounds = array<i64: 1, 128>}, {transform_indices = @transform_11, window_bounds = array<i64: 1, 2, 128>}]} {
    %c0_i32 = arith.constant 0 : i32
    %0 = arith.cmpi eq, %arg0, %c0_i32 : i32
    %1 = arith.extui %0 : i1 to i32
    %c0_i32_0 = arith.constant 0 : i32
    %2 = arith.cmpi ne, %1, %c0_i32_0 : i32
    scf.if %2 {
      %c0 = arith.constant 0 : index
      %c0_2 = arith.constant 0 : index
      %6 = vector.load %arg1[%c0, %c0_2] : memref<32x128xbf16, #tpu.memory_space<vmem>>, vector<32x128xbf16>
      %c0_3 = arith.constant 0 : index
      %c0_4 = arith.constant 0 : index
      %7 = vector.load %arg2[%c0_3, %c0_4] : memref<128x128xbf16, #tpu.memory_space<vmem>>, vector<128x128xbf16>
      %cst = arith.constant dense<0.000000e+00> : vector<32x128xf32>
      %8 = tpu.matmul %6, %7, %cst {dimension_numbers = #tpu.dot_dimension_numbers<[1], [0], [0], [1], [0, 0, 1, 1], [], []>} : vector<32x128xbf16>, vector<128x128xbf16>, vector<32x128xf32> -> vector<32x128xf32>
      %c0_5 = arith.constant 0 : index
      %c0_6 = arith.constant 0 : index
      %9 = vector.load %arg3[%c0_5, %c0_6] : memref<1x128xf32, #tpu.memory_space<vmem>>, vector<1x128xf32>
      %10 = vector.broadcast %9 : vector<1x128xf32> to vector<32x128xf32>
      %11 = arith.addf %8, %10 : vector<32x128xf32>
      %12 = arith.mulf %11, %11 : vector<32x128xf32>
      %13 = arith.mulf %11, %12 : vector<32x128xf32>
      %cst_7 = arith.constant 4.471500e-02 : f32
      %14 = vector.broadcast %cst_7 : f32 to vector<32x128xf32>
      %15 = arith.mulf %14, %13 : vector<32x128xf32>
      %16 = arith.addf %11, %15 : vector<32x128xf32>
      %cst_8 = arith.constant 0.797884583 : f32
      %17 = vector.broadcast %cst_8 : f32 to vector<32x128xf32>
      %18 = arith.mulf %17, %16 : vector<32x128xf32>
      %19 = math.tanh %18 : vector<32x128xf32>
      %cst_9 = arith.constant 1.000000e+00 : f32
      %20 = vector.broadcast %cst_9 : f32 to vector<32x128xf32>
      %21 = arith.addf %20, %19 : vector<32x128xf32>
      %cst_10 = arith.constant 5.000000e-01 : f32
      %22 = vector.broadcast %cst_10 : f32 to vector<32x128xf32>
      %23 = arith.mulf %22, %21 : vector<32x128xf32>
      %24 = arith.mulf %11, %23 : vector<32x128xf32>
      %25 = vector.shape_cast %24 : vector<32x128xf32> to vector<2x16x128xf32>
      %cst_11 = arith.constant dense<0.000000e+00> : vector<2x128xf32>
      %26 = vector.multi_reduction <add>, %25, %cst_11 [1] : vector<2x16x128xf32> to vector<2x128xf32>
      %cst_12 = arith.constant 6.250000e-02 : f32
      %27 = vector.broadcast %cst_12 : f32 to vector<2x128xf32>
      %28 = arith.mulf %26, %27 : vector<2x128xf32>
      %29 = arith.truncf %28 : vector<2x128xf32> to vector<2x128xbf16>
      %c0_13 = arith.constant 0 : index
      %c0_14 = arith.constant 0 : index
      %30 = vector.load %arg4[%c0_13, %c0_14] : memref<128x128xbf16, #tpu.memory_space<vmem>>, vector<128x128xbf16>
      %cst_15 = arith.constant dense<0.000000e+00> : vector<2x128xf32>
      %31 = tpu.matmul %29, %30, %cst_15 {dimension_numbers = #tpu.dot_dimension_numbers<[1], [0], [0], [1], [0, 0, 1, 1], [], []>} : vector<2x128xbf16>, vector<128x128xbf16>, vector<2x128xf32> -> vector<2x128xf32>
      %c0_16 = arith.constant 0 : index
      %c0_17 = arith.constant 0 : index
      %32 = vector.load %arg5[%c0_16, %c0_17] : memref<1x128xf32, #tpu.memory_space<vmem>>, vector<1x128xf32>
      %33 = vector.broadcast %32 : vector<1x128xf32> to vector<2x128xf32>
      %34 = arith.addf %31, %33 : vector<2x128xf32>
      %c0_18 = arith.constant 0 : index
      %c0_19 = arith.constant 0 : index
      %c0_20 = arith.constant 0 : index
      %35 = vector.load %arg12[%c0_18, %c0_19, %c0_20] : memref<1x2x128xf32, #tpu.memory_space<vmem>>, vector<1x2x128xf32>
      %36 = vector.shape_cast %35 : vector<1x2x128xf32> to vector<2x128xf32>
      %37 = vector.shape_cast %34 : vector<2x128xf32> to vector<1x2x128xf32>
      tpu.vector_store %arg12[%c0_18, %c0_19, %c0_20], %37 {strides = array<i32>} : memref<1x2x128xf32, #tpu.memory_space<vmem>>, vector<1x2x128xf32>,
    } else {
    }
    %c1_i32 = arith.constant 1 : i32
    %3 = arith.cmpi eq, %arg0, %c1_i32 : i32
    %4 = arith.extui %3 : i1 to i32
    %c0_i32_1 = arith.constant 0 : i32
    %5 = arith.cmpi ne, %4, %c0_i32_1 : i32
    scf.if %5 {
      %c0 = arith.constant 0 : index
      %c0_2 = arith.constant 0 : index
      %6 = vector.load %arg6[%c0, %c0_2] : memref<1x128xi32, #tpu.memory_space<vmem>>, vector<1x128xi32>
      %7 = tpu.iota {dimensions = array<i32: 0>} : vector<128x128xi32>
      %8 = vector.broadcast %6 : vector<1x128xi32> to vector<128x128xi32>
      %9 = arith.cmpi eq, %7, %8 : vector<128x128xi32>
      %10 = arith.extui %9 : vector<128x128xi1> to vector<128x128xi32>
      %11 = arith.sitofp %10 : vector<128x128xi32> to vector<128x128xf32>
      %12 = arith.truncf %11 : vector<128x128xf32> to vector<128x128xbf16>
      %c0_3 = arith.constant 0 : index
      %c0_4 = arith.constant 0 : index
      %13 = vector.load %arg7[%c0_3, %c0_4] : memref<128x128xbf16, #tpu.memory_space<vmem>>, vector<128x128xbf16>
      %cst = arith.constant dense<0.000000e+00> : vector<128x128xf32>
      %14 = tpu.matmul %12, %13, %cst {dimension_numbers = #tpu.dot_dimension_numbers<[0], [0], [1], [1], [0, 1, 1, 1], [], []>} : vector<128x128xbf16>, vector<128x128xbf16>, vector<128x128xf32> -> vector<128x128xf32>
      %15 = vector.extract_strided_slice %14 {offsets = [0, 0], sizes = [16, 128], strides = [1, 1]} : vector<128x128xf32> to vector<16x128xf32>
      %16 = arith.truncf %15 : vector<16x128xf32> to vector<16x128xbf16>
      %c0_5 = arith.constant 0 : index
      %c0_6 = arith.constant 0 : index
      %17 = vector.load %arg8[%c0_5, %c0_6] : memref<128x128xbf16, #tpu.memory_space<vmem>>, vector<128x128xbf16>
      %cst_7 = arith.constant dense<0.000000e+00> : vector<16x128xf32>
      %18 = tpu.matmul %16, %17, %cst_7 {dimension_numbers = #tpu.dot_dimension_numbers<[1], [0], [0], [1], [0, 0, 1, 1], [], []>} : vector<16x128xbf16>, vector<128x128xbf16>, vector<16x128xf32> -> vector<16x128xf32>
      %c0_8 = arith.constant 0 : index
      %c0_9 = arith.constant 0 : index
      %19 = vector.load %arg9[%c0_8, %c0_9] : memref<1x128xf32, #tpu.memory_space<vmem>>, vector<1x128xf32>
      %20 = vector.broadcast %19 : vector<1x128xf32> to vector<16x128xf32>
      %21 = arith.addf %18, %20 : vector<16x128xf32>
      %22 = arith.mulf %21, %21 : vector<16x128xf32>
      %23 = arith.mulf %21, %22 : vector<16x128xf32>
      %cst_10 = arith.constant 4.471500e-02 : f32
      %24 = vector.broadcast %cst_10 : f32 to vector<16x128xf32>
      %25 = arith.mulf %24, %23 : vector<16x128xf32>
      %26 = arith.addf %21, %25 : vector<16x128xf32>
      %cst_11 = arith.constant 0.797884583 : f32
      %27 = vector.broadcast %cst_11 : f32 to vector<16x128xf32>
      %28 = arith.mulf %27, %26 : vector<16x128xf32>
      %29 = math.tanh %28 : vector<16x128xf32>
      %cst_12 = arith.constant 1.000000e+00 : f32
      %30 = vector.broadcast %cst_12 : f32 to vector<16x128xf32>
      %31 = arith.addf %30, %29 : vector<16x128xf32>
      %cst_13 = arith.constant 5.000000e-01 : f32
      %32 = vector.broadcast %cst_13 : f32 to vector<16x128xf32>
      %33 = arith.mulf %32, %31 : vector<16x128xf32>
      %34 = arith.mulf %21, %33 : vector<16x128xf32>
      %35 = vector.shape_cast %34 : vector<16x128xf32> to vector<2x8x128xf32>
      %cst_14 = arith.constant dense<0.000000e+00> : vector<2x128xf32>
      %36 = vector.multi_reduction <add>, %35, %cst_14 [1] : vector<2x8x128xf32> to vector<2x128xf32>
      %cst_15 = arith.constant 1.250000e-01 : f32
      %37 = vector.broadcast %cst_15 : f32 to vector<2x128xf32>
      %38 = arith.mulf %36, %37 : vector<2x128xf32>
      %39 = arith.truncf %38 : vector<2x128xf32> to vector<2x128xbf16>
      %c0_16 = arith.constant 0 : index
      %c0_17 = arith.constant 0 : index
      %40 = vector.load %arg10[%c0_16, %c0_17] : memref<128x128xbf16, #tpu.memory_space<vmem>>, vector<128x128xbf16>
      %cst_18 = arith.constant dense<0.000000e+00> : vector<2x128xf32>
      %41 = tpu.matmul %39, %40, %cst_18 {dimension_numbers = #tpu.dot_dimension_numbers<[1], [0], [0], [1], [0, 0, 1, 1], [], []>} : vector<2x128xbf16>, vector<128x128xbf16>, vector<2x128xf32> -> vector<2x128xf32>
      %c0_19 = arith.constant 0 : index
      %c0_20 = arith.constant 0 : index
      %42 = vector.load %arg11[%c0_19, %c0_20] : memref<1x128xf32, #tpu.memory_space<vmem>>, vector<1x128xf32>
      %43 = vector.broadcast %42 : vector<1x128xf32> to vector<2x128xf32>
      %44 = arith.addf %41, %43 : vector<2x128xf32>
      %c0_21 = arith.constant 0 : index
      %c0_22 = arith.constant 0 : index
      %c0_23 = arith.constant 0 : index
      %45 = vector.load %arg12[%c0_21, %c0_22, %c0_23] : memref<1x2x128xf32, #tpu.memory_space<vmem>>, vector<1x2x128xf32>
      %46 = vector.shape_cast %45 : vector<1x2x128xf32> to vector<2x128xf32>
      %47 = vector.shape_cast %44 : vector<2x128xf32> to vector<1x2x128xf32>
      tpu.vector_store %arg12[%c0_21, %c0_22, %c0_23], %47 {strides = array<i32>} : memref<1x2x128xf32, #tpu.memory_space<vmem>>, vector<1x2x128xf32>,
    } else {
    }
    return
  }
  func.func @transform_0(%arg0: i32) -> (i32, i32) {
    %c0_i32 = arith.constant 0 : i32
    %c0_i32_0 = arith.constant 0 : i32
    %c0_i32_1 = arith.constant 0 : i32
    return %c0_i32, %c0_i32_0 : i32, i32
  }
  func.func @transform_1(%arg0: i32) -> (i32, i32) {
    %c0_i32 = arith.constant 0 : i32
    %c0_i32_0 = arith.constant 0 : i32
    %c0_i32_1 = arith.constant 0 : i32
    return %c0_i32, %c0_i32_0 : i32, i32
  }
  func.func @transform_2(%arg0: i32) -> (i32, i32) {
    %c0_i32 = arith.constant 0 : i32
    %c0_i32_0 = arith.constant 0 : i32
    %c0_i32_1 = arith.constant 0 : i32
    return %c0_i32, %c0_i32_0 : i32, i32
  }
  func.func @transform_3(%arg0: i32) -> (i32, i32) {
    %c0_i32 = arith.constant 0 : i32
    %c0_i32_0 = arith.constant 0 : i32
    %c0_i32_1 = arith.constant 0 : i32
    return %c0_i32, %c0_i32_0 : i32, i32
  }
  func.func @transform_4(%arg0: i32) -> (i32, i32) {
    %c0_i32 = arith.constant 0 : i32
    %c0_i32_0 = arith.constant 0 : i32
    %c0_i32_1 = arith.constant 0 : i32
    return %c0_i32, %c0_i32_0 : i32, i32
  }
  func.func @transform_5(%arg0: i32) -> (i32, i32) {
    %c0_i32 = arith.constant 0 : i32
    %c0_i32_0 = arith.constant 0 : i32
    %c0_i32_1 = arith.constant 0 : i32
    return %c0_i32, %c0_i32_0 : i32, i32
  }
  func.func @transform_6(%arg0: i32) -> (i32, i32) {
    %c0_i32 = arith.constant 0 : i32
    %c0_i32_0 = arith.constant 0 : i32
    %c0_i32_1 = arith.constant 0 : i32
    return %c0_i32, %c0_i32_0 : i32, i32
  }
  func.func @transform_7(%arg0: i32) -> (i32, i32) {
    %c0_i32 = arith.constant 0 : i32
    %c0_i32_0 = arith.constant 0 : i32
    %c0_i32_1 = arith.constant 0 : i32
    return %c0_i32, %c0_i32_0 : i32, i32
  }
  func.func @transform_8(%arg0: i32) -> (i32, i32) {
    %c0_i32 = arith.constant 0 : i32
    %c0_i32_0 = arith.constant 0 : i32
    %c0_i32_1 = arith.constant 0 : i32
    return %c0_i32, %c0_i32_0 : i32, i32
  }
  func.func @transform_9(%arg0: i32) -> (i32, i32) {
    %c0_i32 = arith.constant 0 : i32
    %c0_i32_0 = arith.constant 0 : i32
    %c0_i32_1 = arith.constant 0 : i32
    return %c0_i32, %c0_i32_0 : i32, i32
  }
  func.func @transform_10(%arg0: i32) -> (i32, i32) {
    %c0_i32 = arith.constant 0 : i32
    %c0_i32_0 = arith.constant 0 : i32
    %c0_i32_1 = arith.constant 0 : i32
    return %c0_i32, %c0_i32_0 : i32, i32
  }
  func.func @transform_11(%arg0: i32) -> (i32, i32, i32) {
    %c0_i32 = arith.constant 0 : i32
    %c0_i32_0 = arith.constant 0 : i32
    %c0_i32_1 = arith.constant 0 : i32
    return %arg0, %c0_i32, %c0_i32_0 : i32, i32, i32
  }
}

</mosaic_0001>

<llo_original>
// kernel: clip_forward.1
$region0: #{clip_forward.1}
  #allocation0 [shape = 'u32[]', space=smem, size = 0x4, offset = 0x4, fixed_abs, tag = 'smem constant byte address 0x4 - core index']
  #allocation1 [shape = 'u32[144,128]{1,0:T(1,128)}', space=vmem, size = 0x12000, scoped, tag = 'internal scratch']
  %s0 = inlined_call_operand.vmem [shape: bf16[32,128], index: 0, kind: input, shape index: {}]
  %s1 = inlined_call_operand.vmem [shape: bf16[128,128], index: 1, kind: input, shape index: {}]
  %s2 = inlined_call_operand.vmem [shape: f32[1,128], index: 2, kind: input, shape index: {}]
  %s3 = inlined_call_operand.vmem [shape: bf16[128,128], index: 3, kind: input, shape index: {}]
  %s4 = inlined_call_operand.vmem [shape: f32[1,128], index: 4, kind: input, shape index: {}]
  %s5 = inlined_call_operand.vmem [shape: s32[1,128], index: 5, kind: input, shape index: {}]
  %s6 = inlined_call_operand.vmem [shape: bf16[128,128], index: 6, kind: input, shape index: {}]
  %s7 = inlined_call_operand.vmem [shape: bf16[128,128], index: 7, kind: input, shape index: {}]
  %s8 = inlined_call_operand.vmem [shape: f32[1,128], index: 8, kind: input, shape index: {}]
  %s9 = inlined_call_operand.vmem [shape: bf16[128,128], index: 9, kind: input, shape index: {}]
  %s10 = inlined_call_operand.vmem [shape: f32[1,128], index: 10, kind: input, shape index: {}]
  %s11 = inlined_call_operand.vmem [shape: f32[2,2,128], index: 11, kind: output, shape index: {}]
  %s12 = sld [smem:[#allocation0]]
  $region85: #{clip_forward.1} parent=0
    _
  %s14 = ssub.s32 1, %s12
  %s15 = scalar_select 0, %s14, %s12
  loop: start=0, step=1, limit=4
  $region2: #{clip_forward.1} parent=0 // loop_pre_header
    _
  $region3: #{clip_forward.1} parent=0 // loop_header
    %s17 = sphi 0, %s21
    %p18 = scmp.ge.s32.totalorder %s17, 4
    %s25 = sphi 0, %s25
    %s27 = sphi 0, %s25
    %s28 = sphi 0, %s27
    %s42 = sphi 0, %s28
    %s46 = sphi 0, %s46
    %s48 = sphi 0, %s46
    %s49 = sphi 0, %s48
    %s63 = sphi 0, %s49
    %s67 = sphi 0, %s67
    %s69 = sphi 0, %s67
    %s70 = sphi 0, %s69
    %s84 = sphi 0, %s70
    %s88 = sphi 0, %s88
    %s90 = sphi 0, %s88
    %s91 = sphi 0, %s90
    %s105 = sphi 0, %s91
    %s109 = sphi 0, %s109
    %s111 = sphi 0, %s109
    %s112 = sphi 0, %s111
    %s126 = sphi 0, %s112
    %s130 = sphi 0, %s130
    %s132 = sphi 0, %s130
    %s133 = sphi 0, %s132
    %s147 = sphi 0, %s133
    %s151 = sphi 0, %s151
    %s153 = sphi 0, %s151
    %s154 = sphi 0, %s153
    %s168 = sphi 0, %s154
    %s172 = sphi 0, %s172
    %s174 = sphi 0, %s172
    %s175 = sphi 0, %s174
    %s189 = sphi 0, %s175
    %s193 = sphi 0, %s193
    %s195 = sphi 0, %s193
    %s196 = sphi 0, %s195
    %s210 = sphi 0, %s196
    %s214 = sphi 0, %s214
    %s216 = sphi 0, %s214
    %s217 = sphi 0, %s216
    %s231 = sphi 0, %s217
    %s235 = sphi 0, %s235
    %s237 = sphi 0, %s235
    %s238 = sphi 0, %s237
    %s252 = sphi 0, %s238
    %s258 = sphi 0, %s260
    %s261 = sphi 0, %s258
    %s262 = sphi 0, %s261
    %s278 = sphi 0, %s262
  $region4: #{clip_forward.1} parent=0 // loop_header_branch
    %20 = sbr.rel (%p18) target = $region8
  $region5: #{clip_forward.1} parent=0 // loop_body
    %s22 = ssub.s32 %s17, 1
    %s23 = ssub.s32 %s17, 2
    %s24 = sadd.s32 %s17, 1
    %s26 = sadd.s32 %s25, 1
    %p29 = scmp.eq.s32.totalorder %s17, 1
    %p30 = scmp.ne.s32.totalorder %s25, %s27
    %p31 = scmp.eq.s32.totalorder %s17, 0
    %p32 = por %p30, %p31
    %p33 = scmp.ne.s32.totalorder %s25, %s27
    %p34 = scmp.eq.s32.totalorder %s22, 1
    %p35 = por %p33, %p34
    %p36 = scmp.ne.s32.totalorder %s27, %s28
    %p37 = scmp.eq.s32.totalorder %s22, 0
    %p38 = por %p36, %p37
    %p39 = scmp.ne.s32.totalorder %s27, %s28
    %p40 = scmp.eq.s32.totalorder %s23, 1
    %p41 = por %p39, %p40
    %p43 = scmp.ne.s32.totalorder %s28, %s42
    %p44 = scmp.eq.s32.totalorder %s23, 0
    %p45 = por %p43, %p44
    %s47 = sadd.s32 %s46, 1
    %p50 = scmp.eq.s32.totalorder %s17, 1
    %p51 = scmp.ne.s32.totalorder %s46, %s48
    %p52 = scmp.eq.s32.totalorder %s17, 0
    %p53 = por %p51, %p52
    %p54 = scmp.ne.s32.totalorder %s46, %s48
    %p55 = scmp.eq.s32.totalorder %s22, 1
    %p56 = por %p54, %p55
    %p57 = scmp.ne.s32.totalorder %s48, %s49
    %p58 = scmp.eq.s32.totalorder %s22, 0
    %p59 = por %p57, %p58
    %p60 = scmp.ne.s32.totalorder %s48, %s49
    %p61 = scmp.eq.s32.totalorder %s23, 1
    %p62 = por %p60, %p61
    %p64 = scmp.ne.s32.totalorder %s49, %s63
    %p65 = scmp.eq.s32.totalorder %s23, 0
    %p66 = por %p64, %p65
    %s68 = sadd.s32 %s67, 1
    %p71 = scmp.eq.s32.totalorder %s17, 1
    %p72 = scmp.ne.s32.totalorder %s67, %s69
    %p73 = scmp.eq.s32.totalorder %s17, 0
    %p74 = por %p72, %p73
    %p75 = scmp.ne.s32.totalorder %s67, %s69
    %p76 = scmp.eq.s32.totalorder %s22, 1
    %p77 = por %p75, %p76
    %p78 = scmp.ne.s32.totalorder %s69, %s70
    %p79 = scmp.eq.s32.totalorder %s22, 0
    %p80 = por %p78, %p79
    %p81 = scmp.ne.s32.totalorder %s69, %s70
    %p82 = scmp.eq.s32.totalorder %s23, 1
    %p83 = por %p81, %p82
    %p85 = scmp.ne.s32.totalorder %s70, %s84
    %p86 = scmp.eq.s32.totalorder %s23, 0
    %p87 = por %p85, %p86
    %s89 = sadd.s32 %s88, 1
    %p92 = scmp.eq.s32.totalorder %s17, 1
    %p93 = scmp.ne.s32.totalorder %s88, %s90
    %p94 = scmp.eq.s32.totalorder %s17, 0
    %p95 = por %p93, %p94
    %p96 = scmp.ne.s32.totalorder %s88, %s90
    %p97 = scmp.eq.s32.totalorder %s22, 1
    %p98 = por %p96, %p97
    %p99 = scmp.ne.s32.totalorder %s90, %s91
    %p100 = scmp.eq.s32.totalorder %s22, 0
    %p101 = por %p99, %p100
    %p102 = scmp.ne.s32.totalorder %s90, %s91
    %p103 = scmp.eq.s32.totalorder %s23, 1
    %p104 = por %p102, %p103
    %p106 = scmp.ne.s32.totalorder %s91, %s105
    %p107 = scmp.eq.s32.totalorder %s23, 0
    %p108 = por %p106, %p107
    %s110 = sadd.s32 %s109, 1
    %p113 = scmp.eq.s32.totalorder %s17, 1
    %p114 = scmp.ne.s32.totalorder %s109, %s111
    %p115 = scmp.eq.s32.totalorder %s17, 0
    %p116 = por %p114, %p115
    %p117 = scmp.ne.s32.totalorder %s109, %s111
    %p118 = scmp.eq.s32.totalorder %s22, 1
    %p119 = por %p117, %p118
    %p120 = scmp.ne.s32.totalorder %s111, %s112
    %p121 = scmp.eq.s32.totalorder %s22, 0
    %p122 = por %p120, %p121
    %p123 = scmp.ne.s32.totalorder %s111, %s112
    %p124 = scmp.eq.s32.totalorder %s23, 1
    %p125 = por %p123, %p124
    %p127 = scmp.ne.s32.totalorder %s112, %s126
    %p128 = scmp.eq.s32.totalorder %s23, 0
    %p129 = por %p127, %p128
    %s131 = sadd.s32 %s130, 1
    %p134 = scmp.eq.s32.totalorder %s17, 1
    %p135 = scmp.ne.s32.totalorder %s130, %s132
    %p136 = scmp.eq.s32.totalorder %s17, 0
    %p137 = por %p135, %p136
    %p138 = scmp.ne.s32.totalorder %s130, %s132
    %p139 = scmp.eq.s32.totalorder %s22, 1
    %p140 = por %p138, %p139
    %p141 = scmp.ne.s32.totalorder %s132, %s133
    %p142 = scmp.eq.s32.totalorder %s22, 0
    %p143 = por %p141, %p142
    %p144 = scmp.ne.s32.totalorder %s132, %s133
    %p145 = scmp.eq.s32.totalorder %s23, 1
    %p146 = por %p144, %p145
    %p148 = scmp.ne.s32.totalorder %s133, %s147
    %p149 = scmp.eq.s32.totalorder %s23, 0
    %p150 = por %p148, %p149
    %s152 = sadd.s32 %s151, 1
    %p155 = scmp.eq.s32.totalorder %s17, 1
    %p156 = scmp.ne.s32.totalorder %s151, %s153
    %p157 = scmp.eq.s32.totalorder %s17, 0
    %p158 = por %p156, %p157
    %p159 = scmp.ne.s32.totalorder %s151, %s153
    %p160 = scmp.eq.s32.totalorder %s22, 1
    %p161 = por %p159, %p160
    %p162 = scmp.ne.s32.totalorder %s153, %s154
    %p163 = scmp.eq.s32.totalorder %s22, 0
    %p164 = por %p162, %p163
    %p165 = scmp.ne.s32.totalorder %s153, %s154
    %p166 = scmp.eq.s32.totalorder %s23, 1
    %p167 = por %p165, %p166
    %p169 = scmp.ne.s32.totalorder %s154, %s168
    %p170 = scmp.eq.s32.totalorder %s23, 0
    %p171 = por %p169, %p170
    %s173 = sadd.s32 %s172, 1
    %p176 = scmp.eq.s32.totalorder %s17, 1
    %p177 = scmp.ne.s32.totalorder %s172, %s174
    %p178 = scmp.eq.s32.totalorder %s17, 0
    %p179 = por %p177, %p178
    %p180 = scmp.ne.s32.totalorder %s172, %s174
    %p181 = scmp.eq.s32.totalorder %s22, 1
    %p182 = por %p180, %p181
    %p183 = scmp.ne.s32.totalorder %s174, %s175
    %p184 = scmp.eq.s32.totalorder %s22, 0
    %p185 = por %p183, %p184
    %p186 = scmp.ne.s32.totalorder %s174, %s175
    %p187 = scmp.eq.s32.totalorder %s23, 1
    %p188 = por %p186, %p187
    %p190 = scmp.ne.s32.totalorder %s175, %s189
    %p191 = scmp.eq.s32.totalorder %s23, 0
    %p192 = por %p190, %p191
    %s194 = sadd.s32 %s193, 1
    %p197 = scmp.eq.s32.totalorder %s17, 1
    %p198 = scmp.ne.s32.totalorder %s193, %s195
    %p199 = scmp.eq.s32.totalorder %s17, 0
    %p200 = por %p198, %p199
    %p201 = scmp.ne.s32.totalorder %s193, %s195
    %p202 = scmp.eq.s32.totalorder %s22, 1
    %p203 = por %p201, %p202
    %p204 = scmp.ne.s32.totalorder %s195, %s196
    %p205 = scmp.eq.s32.totalorder %s22, 0
    %p206 = por %p204, %p205
    %p207 = scmp.ne.s32.totalorder %s195, %s196
    %p208 = scmp.eq.s32.totalorder %s23, 1
    %p209 = por %p207, %p208
    %p211 = scmp.ne.s32.totalorder %s196, %s210
    %p212 = scmp.eq.s32.totalorder %s23, 0
    %p213 = por %p211, %p212
    %s215 = sadd.s32 %s214, 1
    %p218 = scmp.eq.s32.totalorder %s17, 1
    %p219 = scmp.ne.s32.totalorder %s214, %s216
    %p220 = scmp.eq.s32.totalorder %s17, 0
    %p221 = por %p219, %p220
    %p222 = scmp.ne.s32.totalorder %s214, %s216
    %p223 = scmp.eq.s32.totalorder %s22, 1
    %p224 = por %p222, %p223
    %p225 = scmp.ne.s32.totalorder %s216, %s217
    %p226 = scmp.eq.s32.totalorder %s22, 0
    %p227 = por %p225, %p226
    %p228 = scmp.ne.s32.totalorder %s216, %s217
    %p229 = scmp.eq.s32.totalorder %s23, 1
    %p230 = por %p228, %p229
    %p232 = scmp.ne.s32.totalorder %s217, %s231
    %p233 = scmp.eq.s32.totalorder %s23, 0
    %p234 = por %p232, %p233
    %s236 = sadd.s32 %s235, 1
    %p239 = scmp.eq.s32.totalorder %s17, 1
    %p240 = scmp.ne.s32.totalorder %s235, %s237
    %p241 = scmp.eq.s32.totalorder %s17, 0
    %p242 = por %p240, %p241
    %p243 = scmp.ne.s32.totalorder %s235, %s237
    %p244 = scmp.eq.s32.totalorder %s22, 1
    %p245 = por %p243, %p244
    %p246 = scmp.ne.s32.totalorder %s237, %s238
    %p247 = scmp.eq.s32.totalorder %s22, 0
    %p248 = por %p246, %p247
    %p249 = scmp.ne.s32.totalorder %s237, %s238
    %p250 = scmp.eq.s32.totalorder %s23, 1
    %p251 = por %p249, %p250
    %p253 = scmp.ne.s32.totalorder %s238, %s252
    %p254 = scmp.eq.s32.totalorder %s23, 0
    %p255 = por %p253, %p254
    %s256 = ssub.s32 %s17, %s24
    %p257 = scmp.eq.s32.totalorder %s256, 0
    %s259 = sadd.s32 %s258, 1
    %s260 = scalar_select %p257, %s258, %s259
    %p263 = pneg %p257
    %p264 = scmp.eq.s32.totalorder %s17, 1
    %p265 = por %p263, %p264
    %p266 = scmp.ne.s32.totalorder %s258, %s261
    %p267 = scmp.eq.s32.totalorder %s17, 0
    %p268 = por %p266, %p267
    %p269 = scmp.ne.s32.totalorder %s258, %s261
    %p270 = scmp.eq.s32.totalorder %s22, 1
    %p271 = por %p269, %p270
    %p272 = scmp.ne.s32.totalorder %s261, %s262
    %p273 = scmp.eq.s32.totalorder %s22, 0
    %p274 = por %p272, %p273
    %p275 = scmp.ne.s32.totalorder %s261, %s262
    %p276 = scmp.eq.s32.totalorder %s23, 1
    %p277 = por %p275, %p276
    %p279 = scmp.ne.s32.totalorder %s262, %s278
    %p280 = scmp.eq.s32.totalorder %s23, 0
    %p281 = por %p279, %p280
    %p282 = scmp.le.s32.totalorder 1, %s17
    %p283 = scmp.lt.s32.totalorder %s17, 3
    %p284 = pnand %p282, %p283
    %p285 = pneg %p284
    // Predicated region
    $region9: #{clip_forward.1} parent=5 // pred_check
      _
    $region10: #{clip_forward.1} parent=5 // pred_check_branch
      %287 = sbr.rel (%p284) target = $region12
    $region11: #{clip_forward.1} parent=5 // pred_region
      %s288 = ssub.s32 %s17, 1
      // Predicated region
      $region13: #{clip_forward.1} parent=11 // pred_check
        %p289 = pneg %p38
      $region14: #{clip_forward.1} parent=11 // pred_check_branch
        %291 = sbr.rel (%p289) target = $region16
      $region15: #{clip_forward.1} parent=11 // pred_region
        _
      $region16: #{clip_forward.1} parent=11 // pred_fallthru
        _
      // Predicated region
      $region17: #{clip_forward.1} parent=11 // pred_check
        %p292 = pneg %p59
      $region18: #{clip_forward.1} parent=11 // pred_check_branch
        %294 = sbr.rel (%p292) target = $region20
      $region19: #{clip_forward.1} parent=11 // pred_region
        _
      $region20: #{clip_forward.1} parent=11 // pred_fallthru
        _
      // Predicated region
      $region21: #{clip_forward.1} parent=11 // pred_check
        %p295 = pneg %p80
      $region22: #{clip_forward.1} parent=11 // pred_check_branch
        %297 = sbr.rel (%p295) target = $region24
      $region23: #{clip_forward.1} parent=11 // pred_region
        _
      $region24: #{clip_forward.1} parent=11 // pred_fallthru
        _
      // Predicated region
      $region25: #{clip_forward.1} parent=11 // pred_check
        %p298 = pneg %p101
      $region26: #{clip_forward.1} parent=11 // pred_check_branch
        %300 = sbr.rel (%p298) target = $region28
      $region27: #{clip_forward.1} parent=11 // pred_region
        _
      $region28: #{clip_forward.1} parent=11 // pred_fallthru
        _
      // Predicated region
      $region29: #{clip_forward.1} parent=11 // pred_check
        %p301 = pneg %p122
      $region30: #{clip_forward.1} parent=11 // pred_check_branch
        %303 = sbr.rel (%p301) target = $region32
      $region31: #{clip_forward.1} parent=11 // pred_region
        _
      $region32: #{clip_forward.1} parent=11 // pred_fallthru
        _
      // Predicated region
      $region33: #{clip_forward.1} parent=11 // pred_check
        %p304 = pneg %p143
      $region34: #{clip_forward.1} parent=11 // pred_check_branch
        %306 = sbr.rel (%p304) target = $region36
      $region35: #{clip_forward.1} parent=11 // pred_region
        _
      $region36: #{clip_forward.1} parent=11 // pred_fallthru
        _
      // Predicated region
      $region37: #{clip_forward.1} parent=11 // pred_check
        %p307 = pneg %p164
      $region38: #{clip_forward.1} parent=11 // pred_check_branch
        %309 = sbr.rel (%p307) target = $region40
      $region39: #{clip_forward.1} parent=11 // pred_region
        _
      $region40: #{clip_forward.1} parent=11 // pred_fallthru
        _
      // Predicated region
      $region41: #{clip_forward.1} parent=11 // pred_check
        %p310 = pneg %p185
      $region42: #{clip_forward.1} parent=11 // pred_check_branch
        %312 = sbr.rel (%p310) target = $region44
      $region43: #{clip_forward.1} parent=11 // pred_region
        _
      $region44: #{clip_forward.1} parent=11 // pred_fallthru
        _
      // Predicated region
      $region45: #{clip_forward.1} parent=11 // pred_check
        %p313 = pneg %p206
      $region46: #{clip_forward.1} parent=11 // pred_check_branch
        %315 = sbr.rel (%p313) target = $region48
      $region47: #{clip_forward.1} parent=11 // pred_region
        _
      $region48: #{clip_forward.1} parent=11 // pred_fallthru
        _
      // Predicated region
      $region49: #{clip_forward.1} parent=11 // pred_check
        %p316 = pneg %p227
      $region50: #{clip_forward.1} parent=11 // pred_check_branch
        %318 = sbr.rel (%p316) target = $region52
      $region51: #{clip_forward.1} parent=11 // pred_region
        _
      $region52: #{clip_forward.1} parent=11 // pred_fallthru
        _
      // Predicated region
      $region53: #{clip_forward.1} parent=11 // pred_check
        %p319 = pneg %p248
      $region54: #{clip_forward.1} parent=11 // pred_check_branch
        %321 = sbr.rel (%p319) target = $region56
      $region55: #{clip_forward.1} parent=11 // pred_region
        _
      $region56: #{clip_forward.1} parent=11 // pred_fallthru
        _
    $region12: #{clip_forward.1} parent=5 // pred_fallthru
      _
    %p322 = scmp.lt.s32.totalorder %s17, 2
    // Predicated region
    $region57: #{clip_forward.1} parent=5 // pred_check
      %p323 = pneg %p322
    $region58: #{clip_forward.1} parent=5 // pred_check_branch
      %325 = sbr.rel (%p323) target = $region60
    $region59: #{clip_forward.1} parent=5 // pred_region
      _
    $region60: #{clip_forward.1} parent=5 // pred_fallthru
      _
    %p326 = scmp.le.s32.totalorder 1, %s17
    %p327 = scmp.lt.s32.totalorder %s17, 3
    %p328 = pnand %p326, %p327
    %p329 = pneg %p328
    // Predicated region
    $region61: #{clip_forward.1} parent=5 // pred_check
      _
    $region62: #{clip_forward.1} parent=5 // pred_check_branch
      %331 = sbr.rel (%p328) target = $region64
    $region63: #{clip_forward.1} parent=5 // pred_region
      %s332 = ssub.s32 %s17, 1
      %p333 = pneg %p38
      %p334 = pneg %p35
      %p335 = pneg %p59
      %p336 = pneg %p56
      %p337 = pneg %p80
      %p338 = pneg %p77
      %p339 = pneg %p101
      %p340 = pneg %p98
      %p341 = pneg %p122
      %p342 = pneg %p119
      %p343 = pneg %p143
      %p344 = pneg %p140
      %p345 = pneg %p164
      %p346 = pneg %p161
      %p347 = pneg %p185
      %p348 = pneg %p182
      %p349 = pneg %p206
      %p350 = pneg %p203
      %p351 = pneg %p227
      %p352 = pneg %p224
      %p353 = pneg %p248
      %p354 = pneg %p245
      %p355 = pneg %p274
      %p356 = pneg %p271
      %p357 = scmp.lt.s32.totalorder %s22, 1
      %s358 = scalar_select %p357, %s22, 1
      %s359 = smul.addr %s358, 2
      %s360 = scalar_lea.vmem %s11, %s359
      %p361 = scmp.lt.s32.totalorder %s22, 1
      %s362 = scalar_select %p361, %s22, 1
      %s363 = smul.addr %s362, 2
      %s364 = scalar_lea.vmem %s11, %s363
      %p366 = scmp.eq.s32.totalorder %s22, 0
      // Predicated region
      $region65: #{clip_forward.1} parent=63 // pred_check
        %p367 = pneg %p366
      $region66: #{clip_forward.1} parent=63 // pred_check_branch
        %369 = sbr.rel (%p367) target = $region68
      $region67: #{clip_forward.1} parent=63 // pred_region
        %v370 = vld [vmem:[%s0] sm:$0xf]
        %v371 = vld [vmem:[%s0 + $0x4] sm:$0xf]
        %v372 = vld [vmem:[%s0 + $0x8] sm:$0xf]
        %v373 = vld [vmem:[%s0 + $0xc] sm:$0xf]
        %v374 = vld [vmem:[%s1] sm:$0xf]
        %v375 = vld [vmem:[%s1 + $0x4] sm:$0xf]
        %v376 = vld [vmem:[%s1 + $0x8] sm:$0xf]
        %v377 = vld [vmem:[%s1 + $0xc] sm:$0xf]
        %v378 = vld [vmem:[%s1 + $0x10] sm:$0xf]
        %v379 = vld [vmem:[%s1 + $0x14] sm:$0xf]
        %v380 = vld [vmem:[%s1 + $0x18] sm:$0xf]
        %v381 = vld [vmem:[%s1 + $0x1c] sm:$0xf]
        %v382 = vld [vmem:[%s1 + $0x20] sm:$0xf]
        %v383 = vld [vmem:[%s1 + $0x24] sm:$0xf]
        %v384 = vld [vmem:[%s1 + $0x28] sm:$0xf]
        %v385 = vld [vmem:[%s1 + $0x2c] sm:$0xf]
        %v386 = vld [vmem:[%s1 + $0x30] sm:$0xf]
        %v387 = vld [vmem:[%s1 + $0x34] sm:$0xf]
        %v388 = vld [vmem:[%s1 + $0x38] sm:$0xf]
        %v389 = vld [vmem:[%s1 + $0x3c] sm:$0xf]
        %v390 = vld [vmem:[%s2] sm:$0x1]
        %v392 = vlaneseq
        %v393 = vshrl.u32 %v392, 7
        %v394 = vsub.s32 0, %v393
        %v395 = vrot.slane %v390, %v394
        %v401 = vunpack.c.l.b16 %v370
        %v402 = vunpack.c.l.b16 %v371
        %v403 = vunpack.c.l.b16 %v372
        %v404 = vunpack.c.l.b16 %v373
        %v405 = vpack.c.b16 %v402, %v401
        %v406 = vpack.c.b16 %v404, %v403
        %v425 = vunpack.c.l.b16 %v374
        %v426 = vunpack.c.l.b16 %v375
        %v427 = vunpack.c.l.b16 %v376
        %v428 = vunpack.c.l.b16 %v377
        %v429 = vunpack.c.l.b16 %v378
        %v430 = vunpack.c.l.b16 %v379
        %v431 = vunpack.c.l.b16 %v380
        %v432 = vunpack.c.l.b16 %v381
        %v433 = vunpack.c.l.b16 %v382
        %v434 = vunpack.c.l.b16 %v383
        %v435 = vunpack.c.l.b16 %v384
        %v436 = vunpack.c.l.b16 %v385
        %v437 = vunpack.c.l.b16 %v386
        %v438 = vunpack.c.l.b16 %v387
        %v439 = vunpack.c.l.b16 %v388
        %v440 = vunpack.c.l.b16 %v389
        %v441 = vpack.c.b16 %v426, %v425
        %v442 = vpack.c.b16 %v428, %v427
        %v443 = vpack.c.b16 %v430, %v429
        %v444 = vpack.c.b16 %v432, %v431
        %v445 = vpack.c.b16 %v434, %v433
        %v446 = vpack.c.b16 %v436, %v435
        %v447 = vpack.c.b16 %v438, %v437
        %v448 = vpack.c.b16 %v440, %v439
        %457 = vmatprep.subr.bf16.mxu0 0
        %458 = vmatpush1.bf16.msra.mxu0 %v448
        %459 = vmatprep.subr.bf16.mxu0 0
        %460 = vmatpush1.bf16.msra.mxu0 %v447
        %461 = vmatprep.subr.bf16.mxu0 0
        %462 = vmatpush1.bf16.msra.mxu0 %v446
        %463 = vmatprep.subr.bf16.mxu0 0
        %464 = vmatpush1.bf16.msra.mxu0 %v445
        %465 = vmatprep.subr.bf16.mxu0 0
        %466 = vmatpush1.bf16.msra.mxu0 %v444
        %467 = vmatprep.subr.bf16.mxu0 0
        %468 = vmatpush1.bf16.msra.mxu0 %v443
        %469 = vmatprep.subr.bf16.mxu0 0
        %470 = vmatpush1.bf16.msra.mxu0 %v442
        %471 = vmatprep.subr.bf16.mxu0 0
        %472 = vmatpush1.bf16.msra.mxu0 %v441
        %473 = vmatprep.subr.bf16.mxu0 0
        %474 = vmatpush2.bf16.msra.mxu0 0
        %475 = vmatprep.subr.bf16.mxu0 0
        %476 = vmatpush2.bf16.msra.mxu0 0
        %477 = vmatprep.subr.bf16.mxu0 0
        %478 = vmatpush2.bf16.msra.mxu0 0
        %479 = vmatprep.subr.bf16.mxu0 0
        %480 = vmatpush2.bf16.msra.mxu0 0
        %481 = vmatprep.subr.bf16.mxu0 0
        %482 = vmatpush2.bf16.msra.mxu0 0
        %483 = vmatprep.subr.bf16.mxu0 0
        %484 = vmatpush2.bf16.msra.mxu0 0
        %485 = vmatprep.subr.bf16.mxu0 0
        %486 = vmatpush2.bf16.msra.mxu0 0
        %487 = vmatprep.subr.bf16.mxu0 0
        %488 = vmatpush2.bf16.msra.mxu0 0
        %489 = vmatprep.mubr.bf16.mxu0 0
        %490 = vmatmul.mubr.bf16.gmra.mxu0 %v405
        %v491 = vpop.f32.mrf.mxu0
        %v492 = vadd.f32 %v395, %v491
        %v493 = vpop.f32.mrf.mxu0
        %v494 = vpop.f32.mrf.mxu0
        %v495 = vadd.f32 %v395, %v494
        %v496 = vpop.f32.mrf.mxu0
        %497 = vmatprep.mubr.bf16.mxu0 0
        %498 = vmatmul.mubr.bf16.gmra.mxu0 %v406
        %v499 = vpop.f32.mrf.mxu0
        %v500 = vadd.f32 %v395, %v499
        %v501 = vpop.f32.mrf.mxu0
        %v502 = vpop.f32.mrf.mxu0
        %v503 = vadd.f32 %v395, %v502
        %v504 = vpop.f32.mrf.mxu0
        %505 = vdwg.mxu0
        %v506 = vmul.f32 %v492, %v492
        %v507 = vmul.f32 %v495, %v495
        %v508 = vmul.f32 %v500, %v500
        %v509 = vmul.f32 %v503, %v503
        %v510 = vmul.f32 %v492, %v506
        %v511 = vmul.f32 %v495, %v507
        %v512 = vmul.f32 %v500, %v508
        %v513 = vmul.f32 %v503, %v509
        %v514 = vmul.f32 %v510, 0.044715
        %v515 = vmul.f32 %v511, 0.044715
        %v516 = vmul.f32 %v512, 0.044715
        %v517 = vmul.f32 %v513, 0.044715
        %v518 = vadd.f32 %v492, %v514
        %v519 = vadd.f32 %v495, %v515
        %v520 = vadd.f32 %v500, %v516
        %v521 = vadd.f32 %v503, %v517
        %v522 = vmul.f32 %v518, 0.7978846
        %v523 = vmul.f32 %v519, 0.7978846
        %v524 = vmul.f32 %v520, 0.7978846
        %v525 = vmul.f32 %v521, 0.7978846
        %v526 = vtanh.pop %v522
        %v527 = vtanh.pop %v523
        %v528 = vtanh.pop %v524
        %v529 = vtanh.pop %v525
        %v530 = vadd.f32 %v526, 1.0
        %v531 = vadd.f32 %v527, 1.0
        %v532 = vadd.f32 %v528, 1.0
        %v533 = vadd.f32 %v529, 1.0
        %v534 = vmul.f32 %v530, 0.5
        %v535 = vmul.f32 %v531, 0.5
        %v536 = vmul.f32 %v532, 0.5
        %v537 = vmul.f32 %v533, 0.5
        %v538 = vmul.f32 %v492, %v534
        %v539 = vmul.f32 %v495, %v535
        %v540 = vmul.f32 %v500, %v536
        %v541 = vmul.f32 %v503, %v537
        %v542 = vadd.f32 %v538, %v539
        %v543 = vrot.slane %v542, 4
        %v544 = vadd.f32 %v542, %v543
        %v545 = vrot.slane %v544, 2
        %v546 = vadd.f32 %v544, %v545
        %v547 = vrot.slane %v546, 1
        %v548 = vadd.f32 %v546, %v547
        %v549 = vadd.f32 %v540, %v541
        %v550 = vrot.slane %v549, 4
        %v551 = vadd.f32 %v549, %v550
        %v552 = vrot.slane %v551, 2
        %v553 = vadd.f32 %v551, %v552
        %v554 = vrot.slane %v553, 1
        %v555 = vadd.f32 %v553, %v554
        %v556 = vmul.f32 %v548, 0.0625
        %v557 = vmul.f32 %v555, 0.0625
        %v558 = vpack.c.bf16 %v556, %v556
        %v559 = vpack.c.bf16 %v557, %v557
        %v560 = vld [vmem:[%s3] sm:$0xf]
        %v561 = vld [vmem:[%s3 + $0x4] sm:$0xf]
        %v562 = vld [vmem:[%s3 + $0x8] sm:$0xf]
        %v563 = vld [vmem:[%s3 + $0xc] sm:$0xf]
        %v564 = vld [vmem:[%s3 + $0x10] sm:$0xf]
        %v565 = vld [vmem:[%s3 + $0x14] sm:$0xf]
        %v566 = vld [vmem:[%s3 + $0x18] sm:$0xf]
        %v567 = vld [vmem:[%s3 + $0x1c] sm:$0xf]
        %v568 = vld [vmem:[%s3 + $0x20] sm:$0xf]
        %v569 = vld [vmem:[%s3 + $0x24] sm:$0xf]
        %v570 = vld [vmem:[%s3 + $0x28] sm:$0xf]
        %v571 = vld [vmem:[%s3 + $0x2c] sm:$0xf]
        %v572 = vld [vmem:[%s3 + $0x30] sm:$0xf]
        %v573 = vld [vmem:[%s3 + $0x34] sm:$0xf]
        %v574 = vld [vmem:[%s3 + $0x38] sm:$0xf]
        %v575 = vld [vmem:[%s3 + $0x3c] sm:$0xf]
        %v576 = vld [vmem:[%s4] sm:$0x1]
        %v578 = vlaneseq
        %v579 = vshrl.u32 %v578, 7
        %v580 = vsub.s32 0, %v579
        %v581 = vrot.slane %v576, %v580
        %v585 = vunpack.c.l.b16 %v558
        %v586 = vunpack.c.l.b16 %v559
        %vm587 = vcmask 1041409
        %v588 = vsel %vm587, %v586, %v585
        %v589 = vpack.c.b16 %v588, %v588
        %v607 = vunpack.c.l.b16 %v560
        %v608 = vunpack.c.l.b16 %v561
        %v609 = vunpack.c.l.b16 %v562
        %v610 = vunpack.c.l.b16 %v563
        %v611 = vunpack.c.l.b16 %v564
        %v612 = vunpack.c.l.b16 %v565
        %v613 = vunpack.c.l.b16 %v566
        %v614 = vunpack.c.l.b16 %v567
        %v615 = vunpack.c.l.b16 %v568
        %v616 = vunpack.c.l.b16 %v569
        %v617 = vunpack.c.l.b16 %v570
        %v618 = vunpack.c.l.b16 %v571
        %v619 = vunpack.c.l.b16 %v572
        %v620 = vunpack.c.l.b16 %v573
        %v621 = vunpack.c.l.b16 %v574
        %v622 = vunpack.c.l.b16 %v575
        %v623 = vpack.c.b16 %v608, %v607
        %v624 = vpack.c.b16 %v610, %v609
        %v625 = vpack.c.b16 %v612, %v611
        %v626 = vpack.c.b16 %v614, %v613
        %v627 = vpack.c.b16 %v616, %v615
        %v628 = vpack.c.b16 %v618, %v617
        %v629 = vpack.c.b16 %v620, %v619
        %v630 = vpack.c.b16 %v622, %v621
        %639 = vmatprep.subr.bf16.mxu0 0
        %640 = vmatpush1.bf16.msra.mxu0 %v630
        %641 = vmatprep.subr.bf16.mxu0 0
        %642 = vmatpush1.bf16.msra.mxu0 %v629
        %643 = vmatprep.subr.bf16.mxu0 0
        %644 = vmatpush1.bf16.msra.mxu0 %v628
        %645 = vmatprep.subr.bf16.mxu0 0
        %646 = vmatpush1.bf16.msra.mxu0 %v627
        %647 = vmatprep.subr.bf16.mxu0 0
        %648 = vmatpush1.bf16.msra.mxu0 %v626
        %649 = vmatprep.subr.bf16.mxu0 0
        %650 = vmatpush1.bf16.msra.mxu0 %v625
        %651 = vmatprep.subr.bf16.mxu0 0
        %652 = vmatpush1.bf16.msra.mxu0 %v624
        %653 = vmatprep.subr.bf16.mxu0 0
        %654 = vmatpush1.bf16.msra.mxu0 %v623
        %655 = vmatprep.subr.bf16.mxu0 0
        %656 = vmatpush2.bf16.msra.mxu0 0
        %657 = vmatprep.subr.bf16.mxu0 0
        %658 = vmatpush2.bf16.msra.mxu0 0
        %659 = vmatprep.subr.bf16.mxu0 0
        %660 = vmatpush2.bf16.msra.mxu0 0
        %661 = vmatprep.subr.bf16.mxu0 0
        %662 = vmatpush2.bf16.msra.mxu0 0
        %663 = vmatprep.subr.bf16.mxu0 0
        %664 = vmatpush2.bf16.msra.mxu0 0
        %665 = vmatprep.subr.bf16.mxu0 0
        %666 = vmatpush2.bf16.msra.mxu0 0
        %667 = vmatprep.subr.bf16.mxu0 0
        %668 = vmatpush2.bf16.msra.mxu0 0
        %669 = vmatprep.subr.bf16.mxu0 0
        %670 = vmatpush2.bf16.msra.mxu0 0
        %671 = vmatprep.mubr.bf16.mxu0 0
        %672 = vmatmul.mubr.bf16.gmra.mxu0 %v589
        %v673 = vpop.f32.mrf.mxu0
        %v674 = vadd.f32 %v581, %v673
        %v675 = vpop.f32.mrf.mxu0
        %v676 = vpop.f32.mrf.mxu0
        %v677 = vpop.f32.mrf.mxu0
        %678 = vdwg.mxu0
        %679 = vst [vmem:[%s364] sm:$0x3] %v674
      $region68: #{clip_forward.1} parent=63 // pred_fallthru
        _
      %p680 = scmp.eq.s32.totalorder %s22, 1
      // Predicated region
      $region69: #{clip_forward.1} parent=63 // pred_check
        %p681 = pneg %p680
      $region70: #{clip_forward.1} parent=63 // pred_check_branch
        %683 = sbr.rel (%p681) target = $region72
      $region71: #{clip_forward.1} parent=63 // pred_region
        %v684 = vld [vmem:[%s5] sm:$0x1]
        %v685 = vlaneseq
        %v686 = vshrl.u32 %v685, 7
        %v687 = vadd.s32 %v686, 8
        %v688 = vadd.s32 %v686, 16
        %v689 = vadd.s32 %v686, 24
        %v690 = vadd.s32 %v686, 32
        %v691 = vadd.s32 %v686, 40
        %v692 = vadd.s32 %v686, 48
        %v693 = vadd.s32 %v686, 56
        %v694 = vadd.s32 %v686, 64
        %v695 = vadd.s32 %v686, 72
        %v696 = vadd.s32 %v686, 80
        %v697 = vadd.s32 %v686, 88
        %v698 = vadd.s32 %v686, 96
        %v699 = vadd.s32 %v686, 104
        %v700 = vadd.s32 %v686, 112
        %v701 = vadd.s32 %v686, 120
        %v702 = vlaneseq
        %v703 = vshrl.u32 %v702, 7
        %v704 = vsub.s32 0, %v703
        %v705 = vrot.slane %v684, %v704
        %vm706 = vcmp.eq.s32.totalorder %v686, %v705
        %vm707 = vcmp.eq.s32.totalorder %v687, %v705
        %vm708 = vcmp.eq.s32.totalorder %v688, %v705
        %vm709 = vcmp.eq.s32.totalorder %v689, %v705
        %vm710 = vcmp.eq.s32.totalorder %v690, %v705
        %vm711 = vcmp.eq.s32.totalorder %v691, %v705
        %vm712 = vcmp.eq.s32.totalorder %v692, %v705
        %vm713 = vcmp.eq.s32.totalorder %v693, %v705
        %vm714 = vcmp.eq.s32.totalorder %v694, %v705
        %vm715 = vcmp.eq.s32.totalorder %v695, %v705
        %vm716 = vcmp.eq.s32.totalorder %v696, %v705
        %vm717 = vcmp.eq.s32.totalorder %v697, %v705
        %vm718 = vcmp.eq.s32.totalorder %v698, %v705
        %vm719 = vcmp.eq.s32.totalorder %v699, %v705
        %vm720 = vcmp.eq.s32.totalorder %v700, %v705
        %vm721 = vcmp.eq.s32.totalorder %v701, %v705
        %v722 = vsel %vm706, 1, 0
        %v723 = vsel %vm707, 1, 0
        %v724 = vsel %vm708, 1, 0
        %v725 = vsel %vm709, 1, 0
        %v726 = vsel %vm710, 1, 0
        %v727 = vsel %vm711, 1, 0
        %v728 = vsel %vm712, 1, 0
        %v729 = vsel %vm713, 1, 0
        %v730 = vsel %vm714, 1, 0
        %v731 = vsel %vm715, 1, 0
        %v732 = vsel %vm716, 1, 0
        %v733 = vsel %vm717, 1, 0
        %v734 = vsel %vm718, 1, 0
        %v735 = vsel %vm719, 1, 0
        %v736 = vsel %vm720, 1, 0
        %v737 = vsel %vm721, 1, 0
        %v738 = vcvt.s32.f32 %v722
        %v739 = vcvt.s32.f32 %v723
        %v740 = vcvt.s32.f32 %v724
        %v741 = vcvt.s32.f32 %v725
        %v742 = vcvt.s32.f32 %v726
        %v743 = vcvt.s32.f32 %v727
        %v744 = vcvt.s32.f32 %v728
        %v745 = vcvt.s32.f32 %v729
        %v746 = vcvt.s32.f32 %v730
        %v747 = vcvt.s32.f32 %v731
        %v748 = vcvt.s32.f32 %v732
        %v749 = vcvt.s32.f32 %v733
        %v750 = vcvt.s32.f32 %v734
        %v751 = vcvt.s32.f32 %v735
        %v752 = vcvt.s32.f32 %v736
        %v753 = vcvt.s32.f32 %v737
        %v754 = vpack.c.bf16 %v739, %v738
        %v755 = vpack.c.bf16 %v741, %v740
        %v756 = vpack.c.bf16 %v743, %v742
        %v757 = vpack.c.bf16 %v745, %v744
        %v758 = vpack.c.bf16 %v747, %v746
        %v759 = vpack.c.bf16 %v749, %v748
        %v760 = vpack.c.bf16 %v751, %v750
        %v761 = vpack.c.bf16 %v753, %v752
        %v762 = vld [vmem:[%s6] sm:$0xf]
        %v763 = vld [vmem:[%s6 + $0x4] sm:$0xf]
        %v764 = vld [vmem:[%s6 + $0x8] sm:$0xf]
        %v765 = vld [vmem:[%s6 + $0xc] sm:$0xf]
        %v766 = vld [vmem:[%s6 + $0x10] sm:$0xf]
        %v767 = vld [vmem:[%s6 + $0x14] sm:$0xf]
        %v768 = vld [vmem:[%s6 + $0x18] sm:$0xf]
        %v769 = vld [vmem:[%s6 + $0x1c] sm:$0xf]
        %v770 = vld [vmem:[%s6 + $0x20] sm:$0xf]
        %v771 = vld [vmem:[%s6 + $0x24] sm:$0xf]
        %v772 = vld [vmem:[%s6 + $0x28] sm:$0xf]
        %v773 = vld [vmem:[%s6 + $0x2c] sm:$0xf]
        %v774 = vld [vmem:[%s6 + $0x30] sm:$0xf]
        %v775 = vld [vmem:[%s6 + $0x34] sm:$0xf]
        %v776 = vld [vmem:[%s6 + $0x38] sm:$0xf]
        %v777 = vld [vmem:[%s6 + $0x3c] sm:$0xf]
        %778 = vxpose.xlu0.c.b16.start [1/8] %v754, 128
        %779 = vxpose.xlu0.c.b16.cont [2/8] %v755, 128
        %780 = vxpose.xlu0.c.b16.cont [3/8] %v756, 128
        %781 = vxpose.xlu0.c.b16.cont [4/8] %v757, 128
        %782 = vxpose.xlu0.c.b16.cont [5/8] %v758, 128
        %783 = vxpose.xlu0.c.b16.cont [6/8] %v759, 128
        %784 = vxpose.xlu0.c.b16.cont [7/8] %v760, 128
        %785 = vxpose.xlu0.c.b16.end [8/8] %v761, 128
        %v786 = vpop.trf.xlu0
        %v787 = vpop.trf.xlu0
        %v788 = vpop.trf.xlu0
        %v789 = vpop.trf.xlu0
        %v790 = vpop.trf.xlu0
        %v791 = vpop.trf.xlu0
        %v792 = vpop.trf.xlu0
        %v793 = vpop.trf.xlu0
        %v810 = vunpack.c.l.b16 %v762
        %v811 = vunpack.c.l.b16 %v763
        %v812 = vunpack.c.l.b16 %v764
        %v813 = vunpack.c.l.b16 %v765
        %v814 = vunpack.c.l.b16 %v766
        %v815 = vunpack.c.l.b16 %v767
        %v816 = vunpack.c.l.b16 %v768
        %v817 = vunpack.c.l.b16 %v769
        %v818 = vunpack.c.l.b16 %v770
        %v819 = vunpack.c.l.b16 %v771
        %v820 = vunpack.c.l.b16 %v772
        %v821 = vunpack.c.l.b16 %v773
        %v822 = vunpack.c.l.b16 %v774
        %v823 = vunpack.c.l.b16 %v775
        %v824 = vunpack.c.l.b16 %v776
        %v825 = vunpack.c.l.b16 %v777
        %v826 = vpack.c.b16 %v811, %v810
        %v827 = vpack.c.b16 %v813, %v812
        %v828 = vpack.c.b16 %v815, %v814
        %v829 = vpack.c.b16 %v817, %v816
        %v830 = vpack.c.b16 %v819, %v818
        %v831 = vpack.c.b16 %v821, %v820
        %v832 = vpack.c.b16 %v823, %v822
        %v833 = vpack.c.b16 %v825, %v824
        %842 = vmatprep.subr.bf16.mxu0 0
        %843 = vmatpush1.bf16.msra.mxu0 %v833
        %844 = vmatprep.subr.bf16.mxu0 0
        %845 = vmatpush1.bf16.msra.mxu0 %v832
        %846 = vmatprep.subr.bf16.mxu0 0
        %847 = vmatpush1.bf16.msra.mxu0 %v831
        %848 = vmatprep.subr.bf16.mxu0 0
        %849 = vmatpush1.bf16.msra.mxu0 %v830
        %850 = vmatprep.subr.bf16.mxu0 0
        %851 = vmatpush1.bf16.msra.mxu0 %v829
        %852 = vmatprep.subr.bf16.mxu0 0
        %853 = vmatpush1.bf16.msra.mxu0 %v828
        %854 = vmatprep.subr.bf16.mxu0 0
        %855 = vmatpush1.bf16.msra.mxu0 %v827
        %856 = vmatprep.subr.bf16.mxu0 0
        %857 = vmatpush1.bf16.msra.mxu0 %v826
        %858 = vmatprep.subr.bf16.mxu0 0
        %859 = vmatpush2.bf16.msra.mxu0 0
        %860 = vmatprep.subr.bf16.mxu0 0
        %861 = vmatpush2.bf16.msra.mxu0 0
        %862 = vmatprep.subr.bf16.mxu0 0
        %863 = vmatpush2.bf16.msra.mxu0 0
        %864 = vmatprep.subr.bf16.mxu0 0
        %865 = vmatpush2.bf16.msra.mxu0 0
        %866 = vmatprep.subr.bf16.mxu0 0
        %867 = vmatpush2.bf16.msra.mxu0 0
        %868 = vmatprep.subr.bf16.mxu0 0
        %869 = vmatpush2.bf16.msra.mxu0 0
        %870 = vmatprep.subr.bf16.mxu0 0
        %871 = vmatpush2.bf16.msra.mxu0 0
        %872 = vmatprep.subr.bf16.mxu0 0
        %873 = vmatpush2.bf16.msra.mxu0 0
        %874 = vmatprep.mubr.bf16.mxu0 0
        %875 = vmatmul.mubr.bf16.gmra.mxu0 %v786
        %v876 = vpop.f32.mrf.mxu0
        %v877 = vadd.f32 0.0, %v876
        %v878 = vpop.f32.mrf.mxu0
        %v879 = vpop.f32.mrf.mxu0
        %v880 = vadd.f32 0.0, %v879
        %v881 = vpop.f32.mrf.mxu0
        %882 = vmatprep.mubr.bf16.mxu0 0
        %883 = vmatmul.mubr.bf16.gmra.mxu0 %v787
        %v884 = vpop.f32.mrf.mxu0
        %v885 = vpop.f32.mrf.mxu0
        %v886 = vpop.f32.mrf.mxu0
        %v887 = vpop.f32.mrf.mxu0
        %888 = vmatprep.mubr.bf16.mxu0 0
        %889 = vmatmul.mubr.bf16.gmra.mxu0 %v788
        %v890 = vpop.f32.mrf.mxu0
        %v891 = vpop.f32.mrf.mxu0
        %v892 = vpop.f32.mrf.mxu0
        %v893 = vpop.f32.mrf.mxu0
        %894 = vmatprep.mubr.bf16.mxu0 0
        %895 = vmatmul.mubr.bf16.gmra.mxu0 %v789
        %v896 = vpop.f32.mrf.mxu0
        %v897 = vpop.f32.mrf.mxu0
        %v898 = vpop.f32.mrf.mxu0
        %v899 = vpop.f32.mrf.mxu0
        %900 = vmatprep.mubr.bf16.mxu0 0
        %901 = vmatmul.mubr.bf16.gmra.mxu0 %v790
        %v902 = vpop.f32.mrf.mxu0
        %v903 = vpop.f32.mrf.mxu0
        %v904 = vpop.f32.mrf.mxu0
        %v905 = vpop.f32.mrf.mxu0
        %906 = vmatprep.mubr.bf16.mxu0 0
        %907 = vmatmul.mubr.bf16.gmra.mxu0 %v791
        %v908 = vpop.f32.mrf.mxu0
        %v909 = vpop.f32.mrf.mxu0
        %v910 = vpop.f32.mrf.mxu0
        %v911 = vpop.f32.mrf.mxu0
        %912 = vmatprep.mubr.bf16.mxu0 0
        %913 = vmatmul.mubr.bf16.gmra.mxu0 %v792
        %v914 = vpop.f32.mrf.mxu0
        %v915 = vpop.f32.mrf.mxu0
        %v916 = vpop.f32.mrf.mxu0
        %v917 = vpop.f32.mrf.mxu0
        %918 = vmatprep.mubr.bf16.mxu0 0
        %919 = vmatmul.mubr.bf16.gmra.mxu0 %v793
        %v920 = vpop.f32.mrf.mxu0
        %v921 = vpop.f32.mrf.mxu0
        %v922 = vpop.f32.mrf.mxu0
        %v923 = vpop.f32.mrf.mxu0
        %924 = vdwg.mxu0
        %v925 = vpack.c.bf16 %v880, %v877
        %v926 = vld [vmem:[%s7] sm:$0xf]
        %v927 = vld [vmem:[%s7 + $0x4] sm:$0xf]
        %v928 = vld [vmem:[%s7 + $0x8] sm:$0xf]
        %v929 = vld [vmem:[%s7 + $0xc] sm:$0xf]
        %v930 = vld [vmem:[%s7 + $0x10] sm:$0xf]
        %v931 = vld [vmem:[%s7 + $0x14] sm:$0xf]
        %v932 = vld [vmem:[%s7 + $0x18] sm:$0xf]
        %v933 = vld [vmem:[%s7 + $0x1c] sm:$0xf]
        %v934 = vld [vmem:[%s7 + $0x20] sm:$0xf]
        %v935 = vld [vmem:[%s7 + $0x24] sm:$0xf]
        %v936 = vld [vmem:[%s7 + $0x28] sm:$0xf]
        %v937 = vld [vmem:[%s7 + $0x2c] sm:$0xf]
        %v938 = vld [vmem:[%s7 + $0x30] sm:$0xf]
        %v939 = vld [vmem:[%s7 + $0x34] sm:$0xf]
        %v940 = vld [vmem:[%s7 + $0x38] sm:$0xf]
        %v941 = vld [vmem:[%s7 + $0x3c] sm:$0xf]
        %v942 = vld [vmem:[%s8] sm:$0x1]
        %v944 = vlaneseq
        %v945 = vshrl.u32 %v944, 7
        %v946 = vsub.s32 0, %v945
        %v947 = vrot.slane %v942, %v946
        %v965 = vunpack.c.l.b16 %v926
        %v966 = vunpack.c.l.b16 %v927
        %v967 = vunpack.c.l.b16 %v928
        %v968 = vunpack.c.l.b16 %v929
        %v969 = vunpack.c.l.b16 %v930
        %v970 = vunpack.c.l.b16 %v931
        %v971 = vunpack.c.l.b16 %v932
        %v972 = vunpack.c.l.b16 %v933
        %v973 = vunpack.c.l.b16 %v934
        %v974 = vunpack.c.l.b16 %v935
        %v975 = vunpack.c.l.b16 %v936
        %v976 = vunpack.c.l.b16 %v937
        %v977 = vunpack.c.l.b16 %v938
        %v978 = vunpack.c.l.b16 %v939
        %v979 = vunpack.c.l.b16 %v940
        %v980 = vunpack.c.l.b16 %v941
        %v981 = vpack.c.b16 %v966, %v965
        %v982 = vpack.c.b16 %v968, %v967
        %v983 = vpack.c.b16 %v970, %v969
        %v984 = vpack.c.b16 %v972, %v971
        %v985 = vpack.c.b16 %v974, %v973
        %v986 = vpack.c.b16 %v976, %v975
        %v987 = vpack.c.b16 %v978, %v977
        %v988 = vpack.c.b16 %v980, %v979
        %997 = vmatprep.subr.bf16.mxu0 0
        %998 = vmatpush1.bf16.msra.mxu0 %v988
        %999 = vmatprep.subr.bf16.mxu0 0
        %1000 = vmatpush1.bf16.msra.mxu0 %v987
        %1001 = vmatprep.subr.bf16.mxu0 0
        %1002 = vmatpush1.bf16.msra.mxu0 %v986
        %1003 = vmatprep.subr.bf16.mxu0 0
        %1004 = vmatpush1.bf16.msra.mxu0 %v985
        %1005 = vmatprep.subr.bf16.mxu0 0
        %1006 = vmatpush1.bf16.msra.mxu0 %v984
        %1007 = vmatprep.subr.bf16.mxu0 0
        %1008 = vmatpush1.bf16.msra.mxu0 %v983
        %1009 = vmatprep.subr.bf16.mxu0 0
        %1010 = vmatpush1.bf16.msra.mxu0 %v982
        %1011 = vmatprep.subr.bf16.mxu0 0
        %1012 = vmatpush1.bf16.msra.mxu0 %v981
        %1013 = vmatprep.subr.bf16.mxu0 0
        %1014 = vmatpush2.bf16.msra.mxu0 0
        %1015 = vmatprep.subr.bf16.mxu0 0
        %1016 = vmatpush2.bf16.msra.mxu0 0
        %1017 = vmatprep.subr.bf16.mxu0 0
        %1018 = vmatpush2.bf16.msra.mxu0 0
        %1019 = vmatprep.subr.bf16.mxu0 0
        %1020 = vmatpush2.bf16.msra.mxu0 0
        %1021 = vmatprep.subr.bf16.mxu0 0
        %1022 = vmatpush2.bf16.msra.mxu0 0
        %1023 = vmatprep.subr.bf16.mxu0 0
        %1024 = vmatpush2.bf16.msra.mxu0 0
        %1025 = vmatprep.subr.bf16.mxu0 0
        %1026 = vmatpush2.bf16.msra.mxu0 0
        %1027 = vmatprep.subr.bf16.mxu0 0
        %1028 = vmatpush2.bf16.msra.mxu0 0
        %1029 = vmatprep.mubr.bf16.mxu0 0
        %1030 = vmatmul.mubr.bf16.gmra.mxu0 %v925
        %v1031 = vpop.f32.mrf.mxu0
        %v1032 = vadd.f32 %v947, %v1031
        %v1033 = vpop.f32.mrf.mxu0
        %v1034 = vpop.f32.mrf.mxu0
        %v1035 = vadd.f32 %v947, %v1034
        %v1036 = vpop.f32.mrf.mxu0
        %1037 = vdwg.mxu0
        %v1038 = vmul.f32 %v1032, %v1032
        %v1039 = vmul.f32 %v1035, %v1035
        %v1040 = vmul.f32 %v1032, %v1038
        %v1041 = vmul.f32 %v1035, %v1039
        %v1042 = vmul.f32 %v1040, 0.044715
        %v1043 = vmul.f32 %v1041, 0.044715
        %v1044 = vadd.f32 %v1032, %v1042
        %v1045 = vadd.f32 %v1035, %v1043
        %v1046 = vmul.f32 %v1044, 0.7978846
        %v1047 = vmul.f32 %v1045, 0.7978846
        %v1048 = vtanh.pop %v1046
        %v1049 = vtanh.pop %v1047
        %v1050 = vadd.f32 %v1048, 1.0
        %v1051 = vadd.f32 %v1049, 1.0
        %v1052 = vmul.f32 %v1050, 0.5
        %v1053 = vmul.f32 %v1051, 0.5
        %v1054 = vmul.f32 %v1032, %v1052
        %v1055 = vmul.f32 %v1035, %v1053
        %v1056 = vrot.slane %v1054, 4
        %v1057 = vadd.f32 %v1054, %v1056
        %v1058 = vrot.slane %v1057, 2
        %v1059 = vadd.f32 %v1057, %v1058
        %v1060 = vrot.slane %v1059, 1
        %v1061 = vadd.f32 %v1059, %v1060
        %v1062 = vrot.slane %v1055, 4
        %v1063 = vadd.f32 %v1055, %v1062
        %v1064 = vrot.slane %v1063, 2
        %v1065 = vadd.f32 %v1063, %v1064
        %v1066 = vrot.slane %v1065, 1
        %v1067 = vadd.f32 %v1065, %v1066
        %v1068 = vmul.f32 %v1061, 0.125
        %v1069 = vmul.f32 %v1067, 0.125
        %v1070 = vpack.c.bf16 %v1068, %v1068
        %v1071 = vpack.c.bf16 %v1069, %v1069
        %v1072 = vld [vmem:[%s9] sm:$0xf]
        %v1073 = vld [vmem:[%s9 + $0x4] sm:$0xf]
        %v1074 = vld [vmem:[%s9 + $0x8] sm:$0xf]
        %v1075 = vld [vmem:[%s9 + $0xc] sm:$0xf]
        %v1076 = vld [vmem:[%s9 + $0x10] sm:$0xf]
        %v1077 = vld [vmem:[%s9 + $0x14] sm:$0xf]
        %v1078 = vld [vmem:[%s9 + $0x18] sm:$0xf]
        %v1079 = vld [vmem:[%s9 + $0x1c] sm:$0xf]
        %v1080 = vld [vmem:[%s9 + $0x20] sm:$0xf]
        %v1081 = vld [vmem:[%s9 + $0x24] sm:$0xf]
        %v1082 = vld [vmem:[%s9 + $0x28] sm:$0xf]
        %v1083 = vld [vmem:[%s9 + $0x2c] sm:$0xf]
        %v1084 = vld [vmem:[%s9 + $0x30] sm:$0xf]
        %v1085 = vld [vmem:[%s9 + $0x34] sm:$0xf]
        %v1086 = vld [vmem:[%s9 + $0x38] sm:$0xf]
        %v1087 = vld [vmem:[%s9 + $0x3c] sm:$0xf]
        %v1088 = vld [vmem:[%s10] sm:$0x1]
        %v1090 = vlaneseq
        %v1091 = vshrl.u32 %v1090, 7
        %v1092 = vsub.s32 0, %v1091
        %v1093 = vrot.slane %v1088, %v1092
        %v1097 = vunpack.c.l.b16 %v1070
        %v1098 = vunpack.c.l.b16 %v1071
        %vm1099 = vcmask 1041409
        %v1100 = vsel %vm1099, %v1098, %v1097
        %v1101 = vpack.c.b16 %v1100, %v1100
        %v1119 = vunpack.c.l.b16 %v1072
        %v1120 = vunpack.c.l.b16 %v1073
        %v1121 = vunpack.c.l.b16 %v1074
        %v1122 = vunpack.c.l.b16 %v1075
        %v1123 = vunpack.c.l.b16 %v1076
        %v1124 = vunpack.c.l.b16 %v1077
        %v1125 = vunpack.c.l.b16 %v1078
        %v1126 = vunpack.c.l.b16 %v1079
        %v1127 = vunpack.c.l.b16 %v1080
        %v1128 = vunpack.c.l.b16 %v1081
        %v1129 = vunpack.c.l.b16 %v1082
        %v1130 = vunpack.c.l.b16 %v1083
        %v1131 = vunpack.c.l.b16 %v1084
        %v1132 = vunpack.c.l.b16 %v1085
        %v1133 = vunpack.c.l.b16 %v1086
        %v1134 = vunpack.c.l.b16 %v1087
        %v1135 = vpack.c.b16 %v1120, %v1119
        %v1136 = vpack.c.b16 %v1122, %v1121
        %v1137 = vpack.c.b16 %v1124, %v1123
        %v1138 = vpack.c.b16 %v1126, %v1125
        %v1139 = vpack.c.b16 %v1128, %v1127
        %v1140 = vpack.c.b16 %v1130, %v1129
        %v1141 = vpack.c.b16 %v1132, %v1131
        %v1142 = vpack.c.b16 %v1134, %v1133
        %1151 = vmatprep.subr.bf16.mxu0 0
        %1152 = vmatpush1.bf16.msra.mxu0 %v1142
        %1153 = vmatprep.subr.bf16.mxu0 0
        %1154 = vmatpush1.bf16.msra.mxu0 %v1141
        %1155 = vmatprep.subr.bf16.mxu0 0
        %1156 = vmatpush1.bf16.msra.mxu0 %v1140
        %1157 = vmatprep.subr.bf16.mxu0 0
        %1158 = vmatpush1.bf16.msra.mxu0 %v1139
        %1159 = vmatprep.subr.bf16.mxu0 0
        %1160 = vmatpush1.bf16.msra.mxu0 %v1138
        %1161 = vmatprep.subr.bf16.mxu0 0
        %1162 = vmatpush1.bf16.msra.mxu0 %v1137
        %1163 = vmatprep.subr.bf16.mxu0 0
        %1164 = vmatpush1.bf16.msra.mxu0 %v1136
        %1165 = vmatprep.subr.bf16.mxu0 0
        %1166 = vmatpush1.bf16.msra.mxu0 %v1135
        %1167 = vmatprep.subr.bf16.mxu0 0
        %1168 = vmatpush2.bf16.msra.mxu0 0
        %1169 = vmatprep.subr.bf16.mxu0 0
        %1170 = vmatpush2.bf16.msra.mxu0 0
        %1171 = vmatprep.subr.bf16.mxu0 0
        %1172 = vmatpush2.bf16.msra.mxu0 0
        %1173 = vmatprep.subr.bf16.mxu0 0
        %1174 = vmatpush2.bf16.msra.mxu0 0
        %1175 = vmatprep.subr.bf16.mxu0 0
        %1176 = vmatpush2.bf16.msra.mxu0 0
        %1177 = vmatprep.subr.bf16.mxu0 0
        %1178 = vmatpush2.bf16.msra.mxu0 0
        %1179 = vmatprep.subr.bf16.mxu0 0
        %1180 = vmatpush2.bf16.msra.mxu0 0
        %1181 = vmatprep.subr.bf16.mxu0 0
        %1182 = vmatpush2.bf16.msra.mxu0 0
        %1183 = vmatprep.mubr.bf16.mxu0 0
        %1184 = vmatmul.mubr.bf16.gmra.mxu0 %v1101
        %v1185 = vpop.f32.mrf.mxu0
        %v1186 = vadd.f32 %v1093, %v1185
        %v1187 = vpop.f32.mrf.mxu0
        %v1188 = vpop.f32.mrf.mxu0
        %v1189 = vpop.f32.mrf.mxu0
        %1190 = vdwg.mxu0
        %1191 = vst [vmem:[%s364] sm:$0x3] %v1186
      $region72: #{clip_forward.1} parent=63 // pred_fallthru
        _
      %p1192 = scmp.lt.s32.totalorder %s22, 1
      %s1193 = scalar_select %p1192, %s22, 1
      %s1194 = smul.addr %s1193, 2
      %s1195 = scalar_lea.vmem %s11, %s1194
      // Predicated region
      $region73: #{clip_forward.1} parent=63 // pred_check
        %p1196 = pneg %p271
      $region74: #{clip_forward.1} parent=63 // pred_check_branch
        %1198 = sbr.rel (%p1196) target = $region76
      $region75: #{clip_forward.1} parent=63 // pred_region
        _
      $region76: #{clip_forward.1} parent=63 // pred_fallthru
        _
    $region64: #{clip_forward.1} parent=5 // pred_fallthru
      _
    %p1199 = scmp.le.s32.totalorder 2, %s17
    // Predicated region
    $region77: #{clip_forward.1} parent=5 // pred_check
      %p1200 = pneg %p1199
    $region78: #{clip_forward.1} parent=5 // pred_check_branch
      %1202 = sbr.rel (%p1200) target = $region80
    $region79: #{clip_forward.1} parent=5 // pred_region
      %s1203 = ssub.s32 %s17, 2
      // Predicated region
      $region81: #{clip_forward.1} parent=79 // pred_check
        %p1204 = pneg %p277
      $region82: #{clip_forward.1} parent=79 // pred_check_branch
        %1206 = sbr.rel (%p1204) target = $region84
      $region83: #{clip_forward.1} parent=79 // pred_region
        %p1207 = scmp.lt.s32.totalorder %s23, 1
        %s1208 = scalar_select %p1207, %s23, 1
        %s1209 = smul.addr %s1208, 2
        %s1210 = scalar_lea.vmem %s11, %s1209
      $region84: #{clip_forward.1} parent=79 // pred_fallthru
        _
    $region80: #{clip_forward.1} parent=5 // pred_fallthru
      _
  $region6: #{clip_forward.1} parent=0 // loop_footer
    %s21 = sadd.s32 1, %s17
  $region7: #{clip_forward.1} parent=0 // loop_footer_branch
    %16 = sbr.rel target = $region3
  $region8: #{clip_forward.1} parent=0 // loop_exit
    _

</llo_original>
